<compile_context>
chip_gen: v6e
topology: v6e:2x2x1
jax: 0.10.0
libtpu: 0.0.40
codegen_flags: <defaults>
</compile_context>

<pallas_src>
import numpy as np
import jax
import jax.numpy as jnp
from jax import lax
from jax.experimental import pallas as pl
from jax.experimental.pallas import tpu as pltpu

CLS_PAD = 128  # lane-dense classifier output width


# ----------------------------------------------------------------------------
# Backbone kernel (per head h, per N-tile):
#   pooled   = (counts @ emb_table) / max(token_count, 1)
#   private  = tanh(pooled @ Wb + bb)
#   x_gates  = private @ W_i + b_i          (hoisted GRU input-path matmul)
# ----------------------------------------------------------------------------
def backbone_kernel(counts_ref, emb_ref, wb_ref, bb_ref, wi_ref, bi_ref, out_ref):
    counts = counts_ref[...]                                        # (bn, V) f32
    pooled_sum = jnp.dot(counts, emb_ref[0],
                         preferred_element_type=jnp.float32)        # (bn, D)
    cnt = jnp.maximum(jnp.sum(counts, axis=1, keepdims=True), 1.0)  # (bn, 1)
    pooled = pooled_sum / cnt
    private = jnp.tanh(jnp.dot(pooled, wb_ref[0],
                               preferred_element_type=jnp.float32) + bb_ref[0])
    x_gates = jnp.dot(private, wi_ref[0],
                      preferred_element_type=jnp.float32) + bi_ref[0]
    out_ref[...] = x_gates[None].astype(out_ref.dtype)              # (1, bn, 3D)


def _pick_block_n(N, vocab, budget_bytes=4 << 20):
    # keep (counts tile x double-buffer) well under the scoped VMEM default,
    # conservative enough for v7x's 64 MiB/TC.
    bn = budget_bytes // (vocab * 4 * 2)
    bn = max(8, min(512, (bn // 8) * 8))
    return N if N <= bn else bn


def backbone_forward(counts, emb, wb, bb, wi, bi):
    H, V, D = emb.shape
    N = counts.shape[0]
    G = wi.shape[2]                                  # 3*D
    bn = _pick_block_n(N, V)
    n_tiles = pl.cdiv(N, bn)
    return pl.pallas_call(
        backbone_kernel,
        out_shape=jax.ShapeDtypeStruct((H, N, G), jnp.float32),
        grid_spec=pltpu.PrefetchScalarGridSpec(
            num_scalar_prefetch=0,
            grid=(H, n_tiles),
            in_specs=[
                pl.BlockSpec((bn, V), lambda h, n: (n, 0)),
                pl.BlockSpec((1, V, D), lambda h, n: (h, 0, 0)),
                pl.BlockSpec((1, D, D), lambda h, n: (h, 0, 0)),
                pl.BlockSpec((1, 1, D), lambda h, n: (h, 0, 0)),
                pl.BlockSpec((1, D, G), lambda h, n: (h, 0, 0)),
                pl.BlockSpec((1, 1, G), lambda h, n: (h, 0, 0)),
            ],
            out_specs=pl.BlockSpec((1, bn, G), lambda h, n: (h, n, 0)),
        ),
        compiler_params=pltpu.CompilerParams(
            dimension_semantics=("parallel", "parallel")),
    )(counts, emb, wb, bb, wi, bi)


# ----------------------------------------------------------------------------
# GRU (1 layer) + Linear head. One kernel invocation per head (grid over heads,
# "parallel"); the time recurrence is an unrolled fori_loop inside the kernel.
# x_gates already contains X @ W_i + b_i, so only the h-path matmul is serial.
# ----------------------------------------------------------------------------
def gru_head_kernel(xg_ref, wh_ref, bh_ref, wcls_ref, bcls_ref, out_ref):
    _, T, B, G = xg_ref.shape
    D = wh_ref.shape[1]

    wh = wh_ref[0]                                        # (D, 3D) stays resident
    bh = jnp.broadcast_to(bh_ref[0], (B, G))              # hoisted bias broadcast
    h0 = jnp.zeros((B, D), jnp.float32)

    def step(t, h):
        xg = xg_ref[0, t]                                 # (B, 3D)
        hg = jnp.dot(h, wh, preferred_element_type=jnp.float32) + bh
        r = jax.nn.sigmoid(xg[:, :D] + hg[:, :D])
        z = jax.nn.sigmoid(xg[:, D:2 * D] + hg[:, D:2 * D])
        n = jnp.tanh(xg[:, 2 * D:] + r * hg[:, 2 * D:])
        return (1.0 - z) * n + z * h

    hT = lax.fori_loop(0, T, step, h0, unroll=True)

    # Dropout(0.4) is identity at inference time.
    logits = jnp.dot(hT, wcls_ref[0],
                     preferred_element_type=jnp.float32) + bcls_ref[0]
    out_ref[...] = logits[None].astype(out_ref.dtype)     # (1, B, CLS_PAD)


def gru_classify(x_gates, wh, bh, wcls, bcls):
    H, T, B, G = x_gates.shape
    D = wh.shape[1]
    CP = wcls.shape[2]
    return pl.pallas_call(
        gru_head_kernel,
        out_shape=jax.ShapeDtypeStruct((H, B, CP), jnp.float32),
        grid_spec=pltpu.PrefetchScalarGridSpec(
            num_scalar_prefetch=0,
            grid=(H,),
            in_specs=[
                pl.BlockSpec((1, T, B, G), lambda h: (h, 0, 0, 0)),
                pl.BlockSpec((1, D, G), lambda h: (h, 0, 0)),
                pl.BlockSpec((1, 1, G), lambda h: (h, 0, 0)),
                pl.BlockSpec((1, D, CP), lambda h: (h, 0, 0)),
                pl.BlockSpec((1, 1, CP), lambda h: (h, 0, 0)),
            ],
            out_specs=pl.BlockSpec((1, B, CP), lambda h: (h, 0, 0)),
        ),
        compiler_params=pltpu.CompilerParams(
            dimension_semantics=("parallel",)),
    )(x_gates, wh, bh, wcls, bcls)


# ----------------------------------------------------------------------------
# Hierarchical forward
# ----------------------------------------------------------------------------
def hierarchical_forward(input_ids, stacked):
    bc_size, dialog_his, utt_len = input_ids.shape
    vocab = stacked["emb"].shape[1]

    # Time-major flatten (cheap int32 transpose) so the backbone output is already
    # (T, B, ...) and no activation transpose is needed between the two kernels.
    ids_tb = jnp.transpose(input_ids, (1, 0, 2)).reshape(-1, utt_len)   # (T*B, L)
    maskf = (ids_tb != 0).astype(jnp.float32)
    N = ids_tb.shape[0]
    rows = jnp.arange(N)[:, None]
    # Exact token-count histogram (padding id 0 contributes 0 via maskf);
    # masked mean pooling then becomes counts @ emb_table inside the kernel.
    counts = jnp.zeros((N, vocab), jnp.float32).at[rows, ids_tb].add(maskf)

    x_gates = backbone_forward(counts, stacked["emb"], stacked["wb"], stacked["bb"],
                               stacked["wi"], stacked["bi"])            # (H, N, 3D)
    H, _, G = x_gates.shape
    x_gates = x_gates.reshape(H, dialog_his, bc_size, G)                # (H, T, B, 3D)

    logits_pad = gru_classify(x_gates, stacked["wh"], stacked["bh"],
                              stacked["wcls"], stacked["bcls"])         # (H, B, 128)
    return [logits_pad[h, :, :num] for h, num in enumerate(stacked["class_num"])]


# ----------------------------------------------------------------------------
# Stack / fuse per-head parameters for the kernel path
# ----------------------------------------------------------------------------
def stack_params(params):
    heads = params["heads"]

    def cat3(g, a, b, c):
        return jnp.concatenate([g[a], g[b], g[c]], axis=-1)

    emb = jnp.stack([h["emb_table"] for h in heads])
    wb = jnp.stack([h["wb"] for h in heads])
    bb = jnp.stack([h["bb"] for h in heads])
    wi = jnp.stack([cat3(h["gru"], "wir", "wiz", "win") for h in heads])   # (H,D,3D)
    bi = jnp.stack([cat3(h["gru"], "bir", "biz", "bin") for h in heads])   # (H,1,3D)
    wh = jnp.stack([cat3(h["gru"], "whr", "whz", "whn") for h in heads])   # (H,D,3D)
    bh = jnp.stack([cat3(h["gru"], "bhr", "bhz", "bhn") for h in heads])   # (H,1,3D)
    class_num = [h["cls"]["w"].shape[1] for h in heads]
    wcls = jnp.stack([jnp.pad(h["cls"]["w"],
                              ((0, 0), (0, CLS_PAD - h["cls"]["w"].shape[1])))
                      for h in heads])                                      # (H,D,128)
    bcls = jnp.stack([jnp.pad(h["cls"]["b"],
                              ((0, 0), (0, CLS_PAD - h["cls"]["b"].shape[1])))
                      for h in heads])                                      # (H,1,128)
    return dict(emb=emb, wb=wb, bb=bb, wi=wi, bi=bi, wh=wh, bh=bh,
                wcls=wcls, bcls=bcls, class_num=class_num)


# ----------------------------------------------------------------------------
# Pure-JAX reference (for correctness check)
# ----------------------------------------------------------------------------
def reference_forward(input_ids, params):
    bc_size, dialog_his, utt_len = input_ids.shape
    flat_ids = input_ids.reshape(-1, utt_len)
    mask = (flat_ids != 0).astype(jnp.float32)

    res = []
    for head in params["heads"]:
        emb = head["emb_table"][flat_ids]
        masked = emb * mask[:, :, None]
        pooled = jnp.sum(masked, axis=1) / jnp.maximum(
            jnp.sum(mask, axis=1, keepdims=True), 1.0)
        private_out = jnp.tanh(pooled @ head["wb"] + head["bb"])
        x_btd = private_out.reshape(bc_size, dialog_his, -1)

        g = head["gru"]

        def step(h, x):
            r = jax.nn.sigmoid(x @ g["wir"] + g["bir"] + h @ g["whr"] + g["bhr"])
            z = jax.nn.sigmoid(x @ g["wiz"] + g["biz"] + h @ g["whz"] + g["bhz"])
            n = jnp.tanh(x @ g["win"] + g["bin"] + r * (h @ g["whn"] + g["bhn"]))
            return (1.0 - z) * n + z * h, None

        h0 = jnp.zeros((bc_size, x_btd.shape[-1]), jnp.float32)
        hT, _ = jax.lax.scan(step, h0, jnp.transpose(x_btd, (1, 0, 2)))
        res.append(hT @ head["cls"]["w"] + head["cls"]["b"])
    return res


# ----------------------------------------------------------------------------
# Deterministic parameter init (xavier-uniform style for dim>1 params)
# ----------------------------------------------------------------------------
def xavier(key, shape):
    fan_in, fan_out = shape[0], shape[1]
    bound = np.sqrt(6.0 / (fan_in + fan_out))
    return jax.random.uniform(key, shape, jnp.float32, -bound, bound)


def make_params(key, class_num, d_model, vocab):
    heads = []
    for num in class_num:
        keys = jax.random.split(key, 20)
        key = keys[0]
        gru = {
            "wir": xavier(keys[1], (d_model, d_model)),
            "wiz": xavier(keys[2], (d_model, d_model)),
            "win": xavier(keys[3], (d_model, d_model)),
            "whr": xavier(keys[4], (d_model, d_model)),
            "whz": xavier(keys[5], (d_model, d_model)),
            "whn": xavier(keys[6], (d_model, d_model)),
            "bir": 0.1 * jax.random.normal(keys[7], (1, d_model), jnp.float32),
            "biz": 0.1 * jax.random.normal(keys[8], (1, d_model), jnp.float32),
            "bin": 0.1 * jax.random.normal(keys[9], (1, d_model), jnp.float32),
            "bhr": 0.1 * jax.random.normal(keys[10], (1, d_model), jnp.float32),
            "bhz": 0.1 * jax.random.normal(keys[11], (1, d_model), jnp.float32),
            "bhn": 0.1 * jax.random.normal(keys[12], (1, d_model), jnp.float32),
        }
        cls = {
            "w": xavier(keys[13], (d_model, num)),
            "b": 0.1 * jax.random.normal(keys[14], (1, num), jnp.float32),
        }
        head = {
            "emb_table": 0.1 * jax.random.normal(keys[15], (vocab, d_model), jnp.float32),
            "wb": xavier(keys[16], (d_model, d_model)),
            "bb": 0.1 * jax.random.normal(keys[17], (1, d_model), jnp.float32),
            "gru": gru,
            "cls": cls,
        }
        heads.append(head)
    return {"heads": heads}


if __name__ == "__main__":
    key = jax.random.PRNGKey(0)
    bc_size, dialog_his, utt_len = 2, 8, 16
    d_model, vocab = 32, 50
    class_num = [2, 3]

    k_ids, k_params = jax.random.split(key)
    # 0 is the padding id -> attention_mask = (input_ids != 0)
    input_ids = jax.random.randint(k_ids, (bc_size, dialog_his, utt_len), 0, vocab,
                                   dtype=jnp.int32)
    params = make_params(k_params, class_num, d_model, vocab)
    stacked = stack_params(params)

    out = hierarchical_forward(input_ids, stacked)
    out = jax.block_until_ready(out)

    ref = reference_forward(input_ids, params)
    for o, r in zip(out, ref):
        np.testing.assert_allclose(np.asarray(o), np.asarray(r),
                                   rtol=1e-3, atol=1e-3)

    print("KERNEL_OK")
</pallas_src>

<mosaic_0001>
module attributes {stable_mosaic.version = 11 : i64} {
  func.func @backbone_kernel(%arg0: i32, %arg1: i32, %arg2: memref<16x50xf32, #tpu.memory_space<vmem>>, %arg3: memref<1x50x32xf32, #tpu.memory_space<vmem>>, %arg4: memref<1x32x32xf32, #tpu.memory_space<vmem>>, %arg5: memref<1x1x32xf32, #tpu.memory_space<vmem>>, %arg6: memref<1x32x96xf32, #tpu.memory_space<vmem>>, %arg7: memref<1x1x96xf32, #tpu.memory_space<vmem>>, %arg8: memref<1x16x96xf32, #tpu.memory_space<vmem>>) attributes {dimension_semantics = [#tpu.dimension_semantics<parallel>, #tpu.dimension_semantics<parallel>], iteration_bounds = array<i64: 2, 1>, scalar_prefetch = 0 : i64, scratch_operands = 0 : i64, tpu.core_type = #tpu.core_type<tc>, window_params = [{transform_indices = @transform_0, window_bounds = array<i64: 16, 50>}, {transform_indices = @transform_1, window_bounds = array<i64: 1, 50, 32>}, {transform_indices = @transform_2, window_bounds = array<i64: 1, 32, 32>}, {transform_indices = @transform_3, window_bounds = array<i64: 1, 1, 32>}, {transform_indices = @transform_4, window_bounds = array<i64: 1, 32, 96>}, {transform_indices = @transform_5, window_bounds = array<i64: 1, 1, 96>}, {transform_indices = @transform_6, window_bounds = array<i64: 1, 16, 96>}]} {
    %c0 = arith.constant 0 : index
    %c0_0 = arith.constant 0 : index
    %0 = vector.load %arg2[%c0, %c0_0] : memref<16x50xf32, #tpu.memory_space<vmem>>, vector<16x50xf32>
    %c0_1 = arith.constant 0 : index
    %c0_2 = arith.constant 0 : index
    %c0_3 = arith.constant 0 : index
    %1 = vector.load %arg3[%c0_1, %c0_2, %c0_3] : memref<1x50x32xf32, #tpu.memory_space<vmem>>, vector<1x50x32xf32>
    %2 = vector.shape_cast %1 : vector<1x50x32xf32> to vector<50x32xf32>
    %cst = arith.constant dense<0.000000e+00> : vector<16x32xf32>
    %3 = tpu.matmul %0, %2, %cst {dimension_numbers = #tpu.dot_dimension_numbers<[1], [0], [0], [1], [0, 0, 1, 1], [], []>} : vector<16x50xf32>, vector<50x32xf32>, vector<16x32xf32> -> vector<16x32xf32>
    %cst_4 = arith.constant dense<0.000000e+00> : vector<16xf32>
    %4 = vector.multi_reduction <add>, %0, %cst_4 [1] : vector<16x50xf32> to vector<16xf32>
    %5 = vector.shape_cast %4 : vector<16xf32> to vector<16x1xf32>
    %cst_5 = arith.constant 1.000000e+00 : f32
    %6 = vector.broadcast %cst_5 : f32 to vector<16x1xf32>
    %7 = arith.maximumf %5, %6 : vector<16x1xf32>
    %8 = vector.broadcast %7 : vector<16x1xf32> to vector<16x32xf32>
    %9 = arith.divf %3, %8 : vector<16x32xf32>
    %c0_6 = arith.constant 0 : index
    %c0_7 = arith.constant 0 : index
    %c0_8 = arith.constant 0 : index
    %10 = vector.load %arg4[%c0_6, %c0_7, %c0_8] : memref<1x32x32xf32, #tpu.memory_space<vmem>>, vector<1x32x32xf32>
    %11 = vector.shape_cast %10 : vector<1x32x32xf32> to vector<32x32xf32>
    %cst_9 = arith.constant dense<0.000000e+00> : vector<16x32xf32>
    %12 = tpu.matmul %9, %11, %cst_9 {dimension_numbers = #tpu.dot_dimension_numbers<[1], [0], [0], [1], [0, 0, 1, 1], [], []>} : vector<16x32xf32>, vector<32x32xf32>, vector<16x32xf32> -> vector<16x32xf32>
    %c0_10 = arith.constant 0 : index
    %c0_11 = arith.constant 0 : index
    %c0_12 = arith.constant 0 : index
    %13 = vector.load %arg5[%c0_10, %c0_11, %c0_12] : memref<1x1x32xf32, #tpu.memory_space<vmem>>, vector<1x1x32xf32>
    %14 = vector.shape_cast %13 : vector<1x1x32xf32> to vector<1x32xf32>
    %15 = vector.broadcast %14 : vector<1x32xf32> to vector<16x32xf32>
    %16 = arith.addf %12, %15 : vector<16x32xf32>
    %17 = math.tanh %16 : vector<16x32xf32>
    %c0_13 = arith.constant 0 : index
    %c0_14 = arith.constant 0 : index
    %c0_15 = arith.constant 0 : index
    %18 = vector.load %arg6[%c0_13, %c0_14, %c0_15] : memref<1x32x96xf32, #tpu.memory_space<vmem>>, vector<1x32x96xf32>
    %19 = vector.shape_cast %18 : vector<1x32x96xf32> to vector<32x96xf32>
    %cst_16 = arith.constant dense<0.000000e+00> : vector<16x96xf32>
    %20 = tpu.matmul %17, %19, %cst_16 {dimension_numbers = #tpu.dot_dimension_numbers<[1], [0], [0], [1], [0, 0, 1, 1], [], []>} : vector<16x32xf32>, vector<32x96xf32>, vector<16x96xf32> -> vector<16x96xf32>
    %c0_17 = arith.constant 0 : index
    %c0_18 = arith.constant 0 : index
    %c0_19 = arith.constant 0 : index
    %21 = vector.load %arg7[%c0_17, %c0_18, %c0_19] : memref<1x1x96xf32, #tpu.memory_space<vmem>>, vector<1x1x96xf32>
    %22 = vector.shape_cast %21 : vector<1x1x96xf32> to vector<1x96xf32>
    %23 = vector.broadcast %22 : vector<1x96xf32> to vector<16x96xf32>
    %24 = arith.addf %20, %23 : vector<16x96xf32>
    %25 = vector.shape_cast %24 : vector<16x96xf32> to vector<1x16x96xf32>
    %c0_20 = arith.constant 0 : index
    %c0_21 = arith.constant 0 : index
    %c0_22 = arith.constant 0 : index
    %26 = vector.load %arg8[%c0_20, %c0_21, %c0_22] : memref<1x16x96xf32, #tpu.memory_space<vmem>>, vector<1x16x96xf32>
    tpu.vector_store %arg8[%c0_20, %c0_21, %c0_22], %25 {strides = array<i32>} : memref<1x16x96xf32, #tpu.memory_space<vmem>>, vector<1x16x96xf32>,
    return
  }
  func.func @transform_0(%arg0: i32, %arg1: i32) -> (i32, i32) {
    %c0_i32 = arith.constant 0 : i32
    %c0_i32_0 = arith.constant 0 : i32
    return %arg1, %c0_i32 : i32, i32
  }
  func.func @transform_1(%arg0: i32, %arg1: i32) -> (i32, i32, i32) {
    %c0_i32 = arith.constant 0 : i32
    %c0_i32_0 = arith.constant 0 : i32
    %c0_i32_1 = arith.constant 0 : i32
    return %arg0, %c0_i32, %c0_i32_0 : i32, i32, i32
  }
  func.func @transform_2(%arg0: i32, %arg1: i32) -> (i32, i32, i32) {
    %c0_i32 = arith.constant 0 : i32
    %c0_i32_0 = arith.constant 0 : i32
    %c0_i32_1 = arith.constant 0 : i32
    return %arg0, %c0_i32, %c0_i32_0 : i32, i32, i32
  }
  func.func @transform_3(%arg0: i32, %arg1: i32) -> (i32, i32, i32) {
    %c0_i32 = arith.constant 0 : i32
    %c0_i32_0 = arith.constant 0 : i32
    %c0_i32_1 = arith.constant 0 : i32
    return %arg0, %c0_i32, %c0_i32_0 : i32, i32, i32
  }
  func.func @transform_4(%arg0: i32, %arg1: i32) -> (i32, i32, i32) {
    %c0_i32 = arith.constant 0 : i32
    %c0_i32_0 = arith.constant 0 : i32
    %c0_i32_1 = arith.constant 0 : i32
    return %arg0, %c0_i32, %c0_i32_0 : i32, i32, i32
  }
  func.func @transform_5(%arg0: i32, %arg1: i32) -> (i32, i32, i32) {
    %c0_i32 = arith.constant 0 : i32
    %c0_i32_0 = arith.constant 0 : i32
    %c0_i32_1 = arith.constant 0 : i32
    return %arg0, %c0_i32, %c0_i32_0 : i32, i32, i32
  }
  func.func @transform_6(%arg0: i32, %arg1: i32) -> (i32, i32, i32) {
    %c0_i32 = arith.constant 0 : i32
    %c0_i32_0 = arith.constant 0 : i32
    return %arg0, %arg1, %c0_i32 : i32, i32, i32
  }
}

</mosaic_0001>

<llo_original>
// kernel: tpu_custom_call.1
$region0: #{tpu_custom_call.1}
  #allocation0 [shape = 'u32[]', space=smem, size = 0x4, offset = 0x4, fixed_abs, tag = 'smem constant byte address 0x4 - core index']
  #allocation1 [shape = 'u32[144,128]{1,0:T(1,128)}', space=vmem, size = 0x12000, scoped, tag = 'internal scratch']
  %s0 = inlined_call_operand.vmem [shape: f32[16,50], index: 0, kind: input, shape index: {}]
  %s1 = inlined_call_operand.vmem [shape: f32[2,50,32], index: 1, kind: input, shape index: {}]
  %s2 = inlined_call_operand.vmem [shape: f32[2,32,32], index: 2, kind: input, shape index: {}]
  %s3 = inlined_call_operand.vmem [shape: f32[2,1,32], index: 3, kind: input, shape index: {}]
  %s4 = inlined_call_operand.vmem [shape: f32[2,32,96], index: 4, kind: input, shape index: {}]
  %s5 = inlined_call_operand.vmem [shape: f32[2,1,96], index: 5, kind: input, shape index: {}]
  %s6 = inlined_call_operand.hbm [shape: f32[2,16,96], index: 6, kind: output, shape index: {}]
  %s7 = sld [smem:[#allocation0]]
  $region57: #{tpu_custom_call.1} parent=0
    _
  %s9 = ssub.s32 1, %s7
  %s10 = scalar_select 0, %s9, %s7
  $region1: #{tpu_custom_call.1} parent=0
    #allocation2 [shape = 'u8[16384]{0}', space=vmem, size = 0x4000, scoped, tag = 'output window, operand 0']
    #allocation3 [shape = 's32[2]{0}', space=sflag, size = 0x8, scoped, tag = 'scoped memory for tpu_custom_call.1']
    %11 = vsyncpa [#allocation3], 0
    %s12 = scalar_lea.sflag [#allocation3], 1
    %13 = vsyncpa %s12, 0
    loop: start=0, step=1, limit=4
    $region2: #{tpu_custom_call.1} parent=1 // loop_pre_header
      _
    $region3: #{tpu_custom_call.1} parent=1 // loop_header
      %s15 = sphi 0, %s19
      %p16 = scmp.ge.s32.totalorder %s15, 4
      %s22 = sphi 0, %s34
      %s23 = sphi 0, %s30
      %s24 = sphi 0, %s22
      %s25 = sphi 0, %s23
      %s26 = sphi 0, %s24
      %s27 = sphi 0, %s25
      %s37 = sphi 0, %s39
      %s40 = sphi 0, %s37
      %s41 = sphi 0, %s40
      %s57 = sphi 0, %s41
      %s63 = sphi 0, %s65
      %s66 = sphi 0, %s63
      %s67 = sphi 0, %s66
      %s83 = sphi 0, %s67
      %s89 = sphi 0, %s91
      %s92 = sphi 0, %s89
      %s93 = sphi 0, %s92
      %s109 = sphi 0, %s93
      %s115 = sphi 0, %s117
      %s118 = sphi 0, %s115
      %s119 = sphi 0, %s118
      %s135 = sphi 0, %s119
      %s141 = sphi 0, %s143
      %s144 = sphi 0, %s141
      %s145 = sphi 0, %s144
      %s161 = sphi 0, %s145
      %s167 = sphi 0, %s169
      %s170 = sphi 0, %s167
      %s171 = sphi 0, %s170
      %s187 = sphi 0, %s171
      %s195 = sphi 0, %s197
      %s198 = sphi 0, %s195
      %s199 = sphi 0, %s198
      %s215 = sphi 0, %s199
    $region4: #{tpu_custom_call.1} parent=1 // loop_header_branch
      %18 = sbr.rel (%p16) target = $region8
    $region5: #{tpu_custom_call.1} parent=1 // loop_body
      %s20 = ssub.s32 %s15, 1
      %s21 = ssub.s32 %s15, 2
      %s28 = sadd.s32 1, %s23
      %p29 = scmp.ge.s32.totalorder %s28, 1
      %s30 = scalar_select %p29, 0, %s28
      %s31 = sadd.s32 1, %s22
      %s32 = scalar_select %p29, %s31, %s22
      %p33 = scmp.ge.s32.totalorder %s32, 2
      %s34 = scalar_select %p33, 0, %s32
      %s35 = ssub.s32 %s23, %s30
      %p36 = scmp.eq.s32.totalorder %s35, 0
      %s38 = sadd.s32 %s37, 1
      %s39 = scalar_select %p36, %s37, %s38
      %p42 = pneg %p36
      %p43 = scmp.eq.s32.totalorder %s15, 1
      %p44 = por %p42, %p43
      %p45 = scmp.ne.s32.totalorder %s37, %s40
      %p46 = scmp.eq.s32.totalorder %s15, 0
      %p47 = por %p45, %p46
      %p48 = scmp.ne.s32.totalorder %s37, %s40
      %p49 = scmp.eq.s32.totalorder %s20, 1
      %p50 = por %p48, %p49
      %p51 = scmp.ne.s32.totalorder %s40, %s41
      %p52 = scmp.eq.s32.totalorder %s20, 0
      %p53 = por %p51, %p52
      %p54 = scmp.ne.s32.totalorder %s40, %s41
      %p55 = scmp.eq.s32.totalorder %s21, 1
      %p56 = por %p54, %p55
      %p58 = scmp.ne.s32.totalorder %s41, %s57
      %p59 = scmp.eq.s32.totalorder %s21, 0
      %p60 = por %p58, %p59
      %s61 = ssub.s32 %s22, %s34
      %p62 = scmp.eq.s32.totalorder %s61, 0
      %s64 = sadd.s32 %s63, 1
      %s65 = scalar_select %p62, %s63, %s64
      %p68 = pneg %p62
      %p69 = scmp.eq.s32.totalorder %s15, 1
      %p70 = por %p68, %p69
      %p71 = scmp.ne.s32.totalorder %s63, %s66
      %p72 = scmp.eq.s32.totalorder %s15, 0
      %p73 = por %p71, %p72
      %p74 = scmp.ne.s32.totalorder %s63, %s66
      %p75 = scmp.eq.s32.totalorder %s20, 1
      %p76 = por %p74, %p75
      %p77 = scmp.ne.s32.totalorder %s66, %s67
      %p78 = scmp.eq.s32.totalorder %s20, 0
      %p79 = por %p77, %p78
      %p80 = scmp.ne.s32.totalorder %s66, %s67
      %p81 = scmp.eq.s32.totalorder %s21, 1
      %p82 = por %p80, %p81
      %p84 = scmp.ne.s32.totalorder %s67, %s83
      %p85 = scmp.eq.s32.totalorder %s21, 0
      %p86 = por %p84, %p85
      %s87 = ssub.s32 %s22, %s34
      %p88 = scmp.eq.s32.totalorder %s87, 0
      %s90 = sadd.s32 %s89, 1
      %s91 = scalar_select %p88, %s89, %s90
      %p94 = pneg %p88
      %p95 = scmp.eq.s32.totalorder %s15, 1
      %p96 = por %p94, %p95
      %p97 = scmp.ne.s32.totalorder %s89, %s92
      %p98 = scmp.eq.s32.totalorder %s15, 0
      %p99 = por %p97, %p98
      %p100 = scmp.ne.s32.totalorder %s89, %s92
      %p101 = scmp.eq.s32.totalorder %s20, 1
      %p102 = por %p100, %p101
      %p103 = scmp.ne.s32.totalorder %s92, %s93
      %p104 = scmp.eq.s32.totalorder %s20, 0
      %p105 = por %p103, %p104
      %p106 = scmp.ne.s32.totalorder %s92, %s93
      %p107 = scmp.eq.s32.totalorder %s21, 1
      %p108 = por %p106, %p107
      %p110 = scmp.ne.s32.totalorder %s93, %s109
      %p111 = scmp.eq.s32.totalorder %s21, 0
      %p112 = por %p110, %p111
      %s113 = ssub.s32 %s22, %s34
      %p114 = scmp.eq.s32.totalorder %s113, 0
      %s116 = sadd.s32 %s115, 1
      %s117 = scalar_select %p114, %s115, %s116
      %p120 = pneg %p114
      %p121 = scmp.eq.s32.totalorder %s15, 1
      %p122 = por %p120, %p121
      %p123 = scmp.ne.s32.totalorder %s115, %s118
      %p124 = scmp.eq.s32.totalorder %s15, 0
      %p125 = por %p123, %p124
      %p126 = scmp.ne.s32.totalorder %s115, %s118
      %p127 = scmp.eq.s32.totalorder %s20, 1
      %p128 = por %p126, %p127
      %p129 = scmp.ne.s32.totalorder %s118, %s119
      %p130 = scmp.eq.s32.totalorder %s20, 0
      %p131 = por %p129, %p130
      %p132 = scmp.ne.s32.totalorder %s118, %s119
      %p133 = scmp.eq.s32.totalorder %s21, 1
      %p134 = por %p132, %p133
      %p136 = scmp.ne.s32.totalorder %s119, %s135
      %p137 = scmp.eq.s32.totalorder %s21, 0
      %p138 = por %p136, %p137
      %s139 = ssub.s32 %s22, %s34
      %p140 = scmp.eq.s32.totalorder %s139, 0
      %s142 = sadd.s32 %s141, 1
      %s143 = scalar_select %p140, %s141, %s142
      %p146 = pneg %p140
      %p147 = scmp.eq.s32.totalorder %s15, 1
      %p148 = por %p146, %p147
      %p149 = scmp.ne.s32.totalorder %s141, %s144
      %p150 = scmp.eq.s32.totalorder %s15, 0
      %p151 = por %p149, %p150
      %p152 = scmp.ne.s32.totalorder %s141, %s144
      %p153 = scmp.eq.s32.totalorder %s20, 1
      %p154 = por %p152, %p153
      %p155 = scmp.ne.s32.totalorder %s144, %s145
      %p156 = scmp.eq.s32.totalorder %s20, 0
      %p157 = por %p155, %p156
      %p158 = scmp.ne.s32.totalorder %s144, %s145
      %p159 = scmp.eq.s32.totalorder %s21, 1
      %p160 = por %p158, %p159
      %p162 = scmp.ne.s32.totalorder %s145, %s161
      %p163 = scmp.eq.s32.totalorder %s21, 0
      %p164 = por %p162, %p163
      %s165 = ssub.s32 %s22, %s34
      %p166 = scmp.eq.s32.totalorder %s165, 0
      %s168 = sadd.s32 %s167, 1
      %s169 = scalar_select %p166, %s167, %s168
      %p172 = pneg %p166
      %p173 = scmp.eq.s32.totalorder %s15, 1
      %p174 = por %p172, %p173
      %p175 = scmp.ne.s32.totalorder %s167, %s170
      %p176 = scmp.eq.s32.totalorder %s15, 0
      %p177 = por %p175, %p176
      %p178 = scmp.ne.s32.totalorder %s167, %s170
      %p179 = scmp.eq.s32.totalorder %s20, 1
      %p180 = por %p178, %p179
      %p181 = scmp.ne.s32.totalorder %s170, %s171
      %p182 = scmp.eq.s32.totalorder %s20, 0
      %p183 = por %p181, %p182
      %p184 = scmp.ne.s32.totalorder %s170, %s171
      %p185 = scmp.eq.s32.totalorder %s21, 1
      %p186 = por %p184, %p185
      %p188 = scmp.ne.s32.totalorder %s171, %s187
      %p189 = scmp.eq.s32.totalorder %s21, 0
      %p190 = por %p188, %p189
      %s191 = ssub.s32 %s22, %s34
      %s192 = ssub.s32 %s23, %s30
      %s193 = sor.u32 %s191, %s192
      %p194 = scmp.eq.s32.totalorder %s193, 0
      %s196 = sadd.s32 %s195, 1
      %s197 = scalar_select %p194, %s195, %s196
      %p200 = pneg %p194
      %p201 = scmp.eq.s32.totalorder %s15, 1
      %p202 = por %p200, %p201
      %p203 = scmp.ne.s32.totalorder %s195, %s198
      %p204 = scmp.eq.s32.totalorder %s15, 0
      %p205 = por %p203, %p204
      %p206 = scmp.ne.s32.totalorder %s195, %s198
      %p207 = scmp.eq.s32.totalorder %s20, 1
      %p208 = por %p206, %p207
      %p209 = scmp.ne.s32.totalorder %s198, %s199
      %p210 = scmp.eq.s32.totalorder %s20, 0
      %p211 = por %p209, %p210
      %p212 = scmp.ne.s32.totalorder %s198, %s199
      %p213 = scmp.eq.s32.totalorder %s21, 1
      %p214 = por %p212, %p213
      %p216 = scmp.ne.s32.totalorder %s199, %s215
      %p217 = scmp.eq.s32.totalorder %s21, 0
      %p218 = por %p216, %p217
      %p219 = scmp.le.s32.totalorder 1, %s15
      %p220 = scmp.lt.s32.totalorder %s15, 3
      %p221 = pnand %p219, %p220
      %p222 = pneg %p221
      // Predicated region
      $region9: #{tpu_custom_call.1} parent=5 // pred_check
        _
      $region10: #{tpu_custom_call.1} parent=5 // pred_check_branch
        %224 = sbr.rel (%p221) target = $region12
      $region11: #{tpu_custom_call.1} parent=5 // pred_region
        %s225 = ssub.s32 %s15, 1
        // Predicated region
        $region13: #{tpu_custom_call.1} parent=11 // pred_check
          %p226 = pneg %p53
        $region14: #{tpu_custom_call.1} parent=11 // pred_check_branch
          %228 = sbr.rel (%p226) target = $region16
        $region15: #{tpu_custom_call.1} parent=11 // pred_region
          %s229 = smul.u32 2, %s25
          %p230 = scmp.lt.s32.totalorder %s229, 1
          %s231 = scalar_select %p230, %s229, 1
          %s232 = smul.addr %s231, 8
          %s233 = scalar_lea.vmem %s0, %s232
          %s234 = smul.u32 2, %s25
        $region16: #{tpu_custom_call.1} parent=11 // pred_fallthru
          _
      $region12: #{tpu_custom_call.1} parent=5 // pred_fallthru
        _
      %p235 = scmp.lt.s32.totalorder %s15, 2
      // Predicated region
      $region17: #{tpu_custom_call.1} parent=5 // pred_check
        %p236 = pneg %p235
      $region18: #{tpu_custom_call.1} parent=5 // pred_check_branch
        %238 = sbr.rel (%p236) target = $region20
      $region19: #{tpu_custom_call.1} parent=5 // pred_region
        // Predicated region
        $region21: #{tpu_custom_call.1} parent=19 // pred_check
          %p239 = pneg %p73
        $region22: #{tpu_custom_call.1} parent=19 // pred_check_branch
          %241 = sbr.rel (%p239) target = $region24
        $region23: #{tpu_custom_call.1} parent=19 // pred_region
          %p242 = scmp.lt.s32.totalorder %s22, 1
          %s243 = scalar_select %p242, %s22, 1
          %s244 = smul.addr %s243, 7
          %s245 = smul.addr %s244, 8
          %s246 = scalar_lea.vmem %s1, %s245
        $region24: #{tpu_custom_call.1} parent=19 // pred_fallthru
          _
        // Predicated region
        $region25: #{tpu_custom_call.1} parent=19 // pred_check
          %p247 = pneg %p99
        $region26: #{tpu_custom_call.1} parent=19 // pred_check_branch
          %249 = sbr.rel (%p247) target = $region28
        $region27: #{tpu_custom_call.1} parent=19 // pred_region
          %p250 = scmp.lt.s32.totalorder %s22, 1
          %s251 = scalar_select %p250, %s22, 1
          %s252 = smul.addr %s251, 4
          %s253 = smul.addr %s252, 8
          %s254 = scalar_lea.vmem %s2, %s253
        $region28: #{tpu_custom_call.1} parent=19 // pred_fallthru
          _
        // Predicated region
        $region29: #{tpu_custom_call.1} parent=19 // pred_check
          %p255 = pneg %p125
        $region30: #{tpu_custom_call.1} parent=19 // pred_check_branch
          %257 = sbr.rel (%p255) target = $region32
        $region31: #{tpu_custom_call.1} parent=19 // pred_region
          %p258 = scmp.lt.s32.totalorder %s22, 1
          %s259 = scalar_select %p258, %s22, 1
          %s260 = scalar_lea.vmem %s3, %s259
        $region32: #{tpu_custom_call.1} parent=19 // pred_fallthru
          _
        // Predicated region
        $region33: #{tpu_custom_call.1} parent=19 // pred_check
          %p261 = pneg %p151
        $region34: #{tpu_custom_call.1} parent=19 // pred_check_branch
          %263 = sbr.rel (%p261) target = $region36
        $region35: #{tpu_custom_call.1} parent=19 // pred_region
          %p264 = scmp.lt.s32.totalorder %s22, 1
          %s265 = scalar_select %p264, %s22, 1
          %s266 = smul.addr %s265, 4
          %s267 = smul.addr %s266, 8
          %s268 = scalar_lea.vmem %s4, %s267
        $region36: #{tpu_custom_call.1} parent=19 // pred_fallthru
          _
        // Predicated region
        $region37: #{tpu_custom_call.1} parent=19 // pred_check
          %p269 = pneg %p177
        $region38: #{tpu_custom_call.1} parent=19 // pred_check_branch
          %271 = sbr.rel (%p269) target = $region40
        $region39: #{tpu_custom_call.1} parent=19 // pred_region
          %p272 = scmp.lt.s32.totalorder %s22, 1
          %s273 = scalar_select %p272, %s22, 1
          %s274 = scalar_lea.vmem %s5, %s273
        $region40: #{tpu_custom_call.1} parent=19 // pred_fallthru
          _
      $region20: #{tpu_custom_call.1} parent=5 // pred_fallthru
        _
      %p275 = scmp.le.s32.totalorder 1, %s15
      %p276 = scmp.lt.s32.totalorder %s15, 3
      %p277 = pnand %p275, %p276
      %p278 = pneg %p277
      // Predicated region
      $region41: #{tpu_custom_call.1} parent=5 // pred_check
        _
      $region42: #{tpu_custom_call.1} parent=5 // pred_check_branch
        %280 = sbr.rel (%p277) target = $region44
      $region43: #{tpu_custom_call.1} parent=5 // pred_region
        %s281 = ssub.s32 %s15, 1
        %s282 = smul.u32 2, %s25
        %p283 = scmp.lt.s32.totalorder %s282, 1
        %s284 = scalar_select %p283, %s282, 1
        %s285 = smul.addr %s284, 8
        %s286 = scalar_lea.vmem %s0, %s285
        %p287 = pneg %p53
        %p288 = pneg %p50
        %p289 = scmp.lt.s32.totalorder %s24, 1
        %s290 = scalar_select %p289, %s24, 1
        %s291 = smul.addr %s290, 7
        %s292 = smul.addr %s291, 8
        %s293 = scalar_lea.vmem %s1, %s292
        %p294 = pneg %p79
        %p295 = pneg %p76
        %p296 = scmp.lt.s32.totalorder %s24, 1
        %s297 = scalar_select %p296, %s24, 1
        %s298 = smul.addr %s297, 4
        %s299 = smul.addr %s298, 8
        %s300 = scalar_lea.vmem %s2, %s299
        %p301 = pneg %p105
        %p302 = pneg %p102
        %p303 = scmp.lt.s32.totalorder %s24, 1
        %s304 = scalar_select %p303, %s24, 1
        %s305 = scalar_lea.vmem %s3, %s304
        %p306 = pneg %p131
        %p307 = pneg %p128
        %p308 = scmp.lt.s32.totalorder %s24, 1
        %s309 = scalar_select %p308, %s24, 1
        %s310 = smul.addr %s309, 4
        %s311 = smul.addr %s310, 8
        %s312 = scalar_lea.vmem %s4, %s311
        %p313 = pneg %p157
        %p314 = pneg %p154
        %p315 = scmp.lt.s32.totalorder %s24, 1
        %s316 = scalar_select %p315, %s24, 1
        %s317 = scalar_lea.vmem %s5, %s316
        %p318 = pneg %p183
        %p319 = pneg %p180
        %p320 = pneg %p211
        %p321 = pneg %p208
        %s322 = sand.u32 %s198, 1
        %s323 = scalar_lea.sflag [#allocation3], %s322
        %s324 = sand.u32 %s198, 1
        %s325 = smul.addr %s324, 16
        %s326 = scalar_lea.vmem [#allocation2], %s325
        %s327 = smul.u32 2, %s25
        %p328 = scmp.lt.s32.totalorder %s327, 1
        %s329 = scalar_select %p328, %s327, 1
        %s330 = smul.addr %s329, 8
        %s331 = scalar_lea.vmem %s0, %s330
        %s332 = smul.u32 2, %s25
        %p333 = scmp.lt.s32.totalorder %s24, 1
        %s334 = scalar_select %p333, %s24, 1
        %s335 = smul.addr %s334, 7
        %s336 = smul.addr %s335, 8
        %s337 = scalar_lea.vmem %s1, %s336
        %p338 = scmp.lt.s32.totalorder %s24, 1
        %s339 = scalar_select %p338, %s24, 1
        %s340 = smul.addr %s339, 4
        %s341 = smul.addr %s340, 8
        %s342 = scalar_lea.vmem %s2, %s341
        %p343 = scmp.lt.s32.totalorder %s24, 1
        %s344 = scalar_select %p343, %s24, 1
        %s345 = scalar_lea.vmem %s3, %s344
        %p346 = scmp.lt.s32.totalorder %s24, 1
        %s347 = scalar_select %p346, %s24, 1
        %s348 = smul.addr %s347, 4
        %s349 = smul.addr %s348, 8
        %s350 = scalar_lea.vmem %s4, %s349
        %p351 = scmp.lt.s32.totalorder %s24, 1
        %s352 = scalar_select %p351, %s24, 1
        %s353 = scalar_lea.vmem %s5, %s352
        %s354 = smul.u32 2, %s25
        %v355 = vld [vmem:[%s331] sm:$0xff]
        %v356 = vld [vmem:[%s331 + $0x8] sm:$0xff]
        %v357 = vld [vmem:[%s337] sm:$0xff]
        %v358 = vld [vmem:[%s337 + $0x8] sm:$0xff]
        %v359 = vld [vmem:[%s337 + $0x10] sm:$0xff]
        %v360 = vld [vmem:[%s337 + $0x18] sm:$0xff]
        %v361 = vld [vmem:[%s337 + $0x20] sm:$0xff]
        %v362 = vld [vmem:[%s337 + $0x28] sm:$0xff]
        %v363 = vld [vmem:[%s337 + $0x30] sm:$0x3]
        %vm364 = vcmask 408576
        %v366 = vsel %vm364, %v355, 0
        %v369 = vsel %vm364, %v356, 0
        %vm371 = vcmask 1041408
        %v373 = vsel %vm371, %v363, 0
        %375 = vmatprep.subr.mxu0 0.0
        %376 = vmatpush1.msra.mxu0 0.0
        %377 = vmatprep.subr.mxu0 0.0
        %378 = vmatpush1.msra.mxu0 0.0
        %379 = vmatprep.subr.mxu0 0.0
        %380 = vmatpush1.msra.mxu0 0.0
        %381 = vmatprep.subr.mxu0 0.0
        %382 = vmatpush1.msra.mxu0 0.0
        %383 = vmatprep.subr.mxu0 0.0
        %384 = vmatpush1.msra.mxu0 0.0
        %385 = vmatprep.subr.mxu0 0.0
        %386 = vmatpush1.msra.mxu0 0.0
        %387 = vmatprep.subr.mxu0 0.0
        %388 = vmatpush1.msra.mxu0 0.0
        %389 = vmatprep.subr.mxu0 0.0
        %390 = vmatpush1.msra.mxu0 0.0
        %391 = vmatprep.subr.mxu0 0.0
        %392 = vmatpush1.msra.mxu0 0.0
        %393 = vmatprep.subr.mxu0 0.0
        %394 = vmatpush1.msra.mxu0 %v373
        %395 = vmatprep.subr.mxu0 0.0
        %396 = vmatpush1.msra.mxu0 %v362
        %397 = vmatprep.subr.mxu0 0.0
        %398 = vmatpush1.msra.mxu0 %v361
        %399 = vmatprep.subr.mxu0 0.0
        %400 = vmatpush1.msra.mxu0 %v360
        %401 = vmatprep.subr.mxu0 0.0
        %402 = vmatpush1.msra.mxu0 %v359
        %403 = vmatprep.subr.mxu0 0.0
        %404 = vmatpush1.msra.mxu0 %v358
        %405 = vmatprep.subr.mxu0 0.0
        %406 = vmatpush1.msra.mxu0 %v357
        %407 = vmatprep.subr.mxu0 0.0
        %408 = vmatpush2.msra.mxu0 0.0
        %409 = vmatprep.subr.mxu0 0.0
        %410 = vmatpush2.msra.mxu0 0.0
        %411 = vmatprep.subr.mxu0 0.0
        %412 = vmatpush2.msra.mxu0 0.0
        %413 = vmatprep.subr.mxu0 0.0
        %414 = vmatpush2.msra.mxu0 0.0
        %415 = vmatprep.subr.mxu0 0.0
        %416 = vmatpush2.msra.mxu0 0.0
        %417 = vmatprep.subr.mxu0 0.0
        %418 = vmatpush2.msra.mxu0 0.0
        %419 = vmatprep.subr.mxu0 0.0
        %420 = vmatpush2.msra.mxu0 0.0
        %421 = vmatprep.subr.mxu0 0.0
        %422 = vmatpush2.msra.mxu0 0.0
        %423 = vmatprep.subr.mxu0 0.0
        %424 = vmatpush2.msra.mxu0 0.0
        %425 = vmatprep.subr.mxu0 0.0
        %426 = vmatpush2.msra.mxu0 0.0
        %427 = vmatprep.subr.mxu0 0.0
        %428 = vmatpush2.msra.mxu0 0.0
        %429 = vmatprep.subr.mxu0 0.0
        %430 = vmatpush2.msra.mxu0 0.0
        %431 = vmatprep.subr.mxu0 0.0
        %432 = vmatpush2.msra.mxu0 0.0
        %433 = vmatprep.subr.mxu0 0.0
        %434 = vmatpush2.msra.mxu0 0.0
        %435 = vmatprep.subr.mxu0 0.0
        %436 = vmatpush2.msra.mxu0 0.0
        %437 = vmatprep.subr.mxu0 0.0
        %438 = vmatpush2.msra.mxu0 0.0
        %439 = vmatprep.mubr.f32.mxu0 0.0
        %440 = vmatmul.mubr.f32.gmra.mxu0 %v366
        %v441 = vpop.f32.mrf.mxu0
        %v442 = vadd.f32 0.0, %v441
        %v443 = vpop.f32.mrf.mxu0
        %444 = vmatprep.mubr.f32.mxu0 0.0
        %445 = vmatmul.mubr.f32.gmra.mxu0 %v369
        %v446 = vpop.f32.mrf.mxu0
        %v447 = vadd.f32 0.0, %v446
        %v448 = vpop.f32.mrf.mxu0
        %449 = vdwg.mxu0
        %v450 = vsel %vm364, %v355, 0.0
        %451 = vadd.xlane.f32.xlu0 %v450
        %v452 = vpop.xlane.xlu0 %451
        %v453 = vsel %vm364, %v356, 0.0
        %454 = vadd.xlane.f32.xlu0 %v453
        %v455 = vpop.xlane.xlu0 %454
        %v456 = vmax.f32 %v452, 1.0
        %v457 = vmax.f32 %v455, 1.0
        %v458 = vrcp.pop %v456
        %v459 = vmul.f32 %v442, %v458
        %v460 = vrcp.pop %v457
        %v461 = vmul.f32 %v447, %v460
        %v462 = vld [vmem:[%s342] sm:$0xff]
        %v463 = vld [vmem:[%s342 + $0x8] sm:$0xff]
        %v464 = vld [vmem:[%s342 + $0x10] sm:$0xff]
        %v465 = vld [vmem:[%s342 + $0x18] sm:$0xff]
        %v466 = vld [vmem:[%s345] sm:$0x1]
        %v468 = vlaneseq
        %v469 = vshrl.u32 %v468, 7
        %v470 = vsub.s32 0, %v469
        %v471 = vrot.slane %v466, %v470
        %vm473 = vcmask 261120
        %v475 = vsel %vm473, %v459, 0
        %v478 = vsel %vm473, %v461, 0
        %480 = vmatprep.subr.mxu0 0.0
        %481 = vmatpush1.msra.mxu0 0.0
        %482 = vmatprep.subr.mxu0 0.0
        %483 = vmatpush1.msra.mxu0 0.0
        %484 = vmatprep.subr.mxu0 0.0
        %485 = vmatpush1.msra.mxu0 0.0
        %486 = vmatprep.subr.mxu0 0.0
        %487 = vmatpush1.msra.mxu0 0.0
        %488 = vmatprep.subr.mxu0 0.0
        %489 = vmatpush1.msra.mxu0 0.0
        %490 = vmatprep.subr.mxu0 0.0
        %491 = vmatpush1.msra.mxu0 0.0
        %492 = vmatprep.subr.mxu0 0.0
        %493 = vmatpush1.msra.mxu0 0.0
        %494 = vmatprep.subr.mxu0 0.0
        %495 = vmatpush1.msra.mxu0 0.0
        %496 = vmatprep.subr.mxu0 0.0
        %497 = vmatpush1.msra.mxu0 0.0
        %498 = vmatprep.subr.mxu0 0.0
        %499 = vmatpush1.msra.mxu0 0.0
        %500 = vmatprep.subr.mxu0 0.0
        %501 = vmatpush1.msra.mxu0 0.0
        %502 = vmatprep.subr.mxu0 0.0
        %503 = vmatpush1.msra.mxu0 0.0
        %504 = vmatprep.subr.mxu0 0.0
        %505 = vmatpush1.msra.mxu0 %v465
        %506 = vmatprep.subr.mxu0 0.0
        %507 = vmatpush1.msra.mxu0 %v464
        %508 = vmatprep.subr.mxu0 0.0
        %509 = vmatpush1.msra.mxu0 %v463
        %510 = vmatprep.subr.mxu0 0.0
        %511 = vmatpush1.msra.mxu0 %v462
        %512 = vmatprep.subr.mxu0 0.0
        %513 = vmatpush2.msra.mxu0 0.0
        %514 = vmatprep.subr.mxu0 0.0
        %515 = vmatpush2.msra.mxu0 0.0
        %516 = vmatprep.subr.mxu0 0.0
        %517 = vmatpush2.msra.mxu0 0.0
        %518 = vmatprep.subr.mxu0 0.0
        %519 = vmatpush2.msra.mxu0 0.0
        %520 = vmatprep.subr.mxu0 0.0
        %521 = vmatpush2.msra.mxu0 0.0
        %522 = vmatprep.subr.mxu0 0.0
        %523 = vmatpush2.msra.mxu0 0.0
        %524 = vmatprep.subr.mxu0 0.0
        %525 = vmatpush2.msra.mxu0 0.0
        %526 = vmatprep.subr.mxu0 0.0
        %527 = vmatpush2.msra.mxu0 0.0
        %528 = vmatprep.subr.mxu0 0.0
        %529 = vmatpush2.msra.mxu0 0.0
        %530 = vmatprep.subr.mxu0 0.0
        %531 = vmatpush2.msra.mxu0 0.0
        %532 = vmatprep.subr.mxu0 0.0
        %533 = vmatpush2.msra.mxu0 0.0
        %534 = vmatprep.subr.mxu0 0.0
        %535 = vmatpush2.msra.mxu0 0.0
        %536 = vmatprep.subr.mxu0 0.0
        %537 = vmatpush2.msra.mxu0 0.0
        %538 = vmatprep.subr.mxu0 0.0
        %539 = vmatpush2.msra.mxu0 0.0
        %540 = vmatprep.subr.mxu0 0.0
        %541 = vmatpush2.msra.mxu0 0.0
        %542 = vmatprep.subr.mxu0 0.0
        %543 = vmatpush2.msra.mxu0 0.0
        %544 = vmatprep.mubr.f32.mxu0 0.0
        %545 = vmatmul.mubr.f32.gmra.mxu0 %v475
        %v546 = vpop.f32.mrf.mxu0
        %v547 = vadd.f32 %v471, %v546
        %v548 = vpop.f32.mrf.mxu0
        %549 = vmatprep.mubr.f32.mxu0 0.0
        %550 = vmatmul.mubr.f32.gmra.mxu0 %v478
        %v551 = vpop.f32.mrf.mxu0
        %v552 = vadd.f32 %v471, %v551
        %v553 = vpop.f32.mrf.mxu0
        %554 = vdwg.mxu0
        %v555 = vtanh.pop %v547
        %v556 = vtanh.pop %v552
        %v557 = vld [vmem:[%s350] sm:$0xff]
        %v558 = vld [vmem:[%s350 + $0x8] sm:$0xff]
        %v559 = vld [vmem:[%s350 + $0x10] sm:$0xff]
        %v560 = vld [vmem:[%s350 + $0x18] sm:$0xff]
        %v561 = vld [vmem:[%s353] sm:$0x1]
        %v563 = vlaneseq
        %v564 = vshrl.u32 %v563, 7
        %v565 = vsub.s32 0, %v564
        %v566 = vrot.slane %v561, %v565
        %v569 = vsel %vm473, %v555, 0
        %v572 = vsel %vm473, %v556, 0
        %574 = vmatprep.subr.mxu0 0.0
        %575 = vmatpush1.msra.mxu0 0.0
        %576 = vmatprep.subr.mxu0 0.0
        %577 = vmatpush1.msra.mxu0 0.0
        %578 = vmatprep.subr.mxu0 0.0
        %579 = vmatpush1.msra.mxu0 0.0
        %580 = vmatprep.subr.mxu0 0.0
        %581 = vmatpush1.msra.mxu0 0.0
        %582 = vmatprep.subr.mxu0 0.0
        %583 = vmatpush1.msra.mxu0 0.0
        %584 = vmatprep.subr.mxu0 0.0
        %585 = vmatpush1.msra.mxu0 0.0
        %586 = vmatprep.subr.mxu0 0.0
        %587 = vmatpush1.msra.mxu0 0.0
        %588 = vmatprep.subr.mxu0 0.0
        %589 = vmatpush1.msra.mxu0 0.0
        %590 = vmatprep.subr.mxu0 0.0
        %591 = vmatpush1.msra.mxu0 0.0
        %592 = vmatprep.subr.mxu0 0.0
        %593 = vmatpush1.msra.mxu0 0.0
        %594 = vmatprep.subr.mxu0 0.0
        %595 = vmatpush1.msra.mxu0 0.0
        %596 = vmatprep.subr.mxu0 0.0
        %597 = vmatpush1.msra.mxu0 0.0
        %598 = vmatprep.subr.mxu0 0.0
        %599 = vmatpush1.msra.mxu0 %v560
        %600 = vmatprep.subr.mxu0 0.0
        %601 = vmatpush1.msra.mxu0 %v559
        %602 = vmatprep.subr.mxu0 0.0
        %603 = vmatpush1.msra.mxu0 %v558
        %604 = vmatprep.subr.mxu0 0.0
        %605 = vmatpush1.msra.mxu0 %v557
        %606 = vmatprep.subr.mxu0 0.0
        %607 = vmatpush2.msra.mxu0 0.0
        %608 = vmatprep.subr.mxu0 0.0
        %609 = vmatpush2.msra.mxu0 0.0
        %610 = vmatprep.subr.mxu0 0.0
        %611 = vmatpush2.msra.mxu0 0.0
        %612 = vmatprep.subr.mxu0 0.0
        %613 = vmatpush2.msra.mxu0 0.0
        %614 = vmatprep.subr.mxu0 0.0
        %615 = vmatpush2.msra.mxu0 0.0
        %616 = vmatprep.subr.mxu0 0.0
        %617 = vmatpush2.msra.mxu0 0.0
        %618 = vmatprep.subr.mxu0 0.0
        %619 = vmatpush2.msra.mxu0 0.0
        %620 = vmatprep.subr.mxu0 0.0
        %621 = vmatpush2.msra.mxu0 0.0
        %622 = vmatprep.subr.mxu0 0.0
        %623 = vmatpush2.msra.mxu0 0.0
        %624 = vmatprep.subr.mxu0 0.0
        %625 = vmatpush2.msra.mxu0 0.0
        %626 = vmatprep.subr.mxu0 0.0
        %627 = vmatpush2.msra.mxu0 0.0
        %628 = vmatprep.subr.mxu0 0.0
        %629 = vmatpush2.msra.mxu0 0.0
        %630 = vmatprep.subr.mxu0 0.0
        %631 = vmatpush2.msra.mxu0 0.0
        %632 = vmatprep.subr.mxu0 0.0
        %633 = vmatpush2.msra.mxu0 0.0
        %634 = vmatprep.subr.mxu0 0.0
        %635 = vmatpush2.msra.mxu0 0.0
        %636 = vmatprep.subr.mxu0 0.0
        %637 = vmatpush2.msra.mxu0 0.0
        %638 = vmatprep.mubr.f32.mxu0 0.0
        %639 = vmatmul.mubr.f32.gmra.mxu0 %v569
        %v640 = vpop.f32.mrf.mxu0
        %v641 = vadd.f32 %v566, %v640
        %v642 = vpop.f32.mrf.mxu0
        %643 = vmatprep.mubr.f32.mxu0 0.0
        %644 = vmatmul.mubr.f32.gmra.mxu0 %v572
        %v645 = vpop.f32.mrf.mxu0
        %v646 = vadd.f32 %v566, %v645
        %v647 = vpop.f32.mrf.mxu0
        %648 = vdwg.mxu0
        %vm649 = vcmask 785408
        %650 = vst.msk [vmem:[%s326] sm:$0xff] %vm649, %v641
        %651 = vst.msk [vmem:[%s326 + $0x8] sm:$0xff] %vm649, %v646
        %s652 = sand.u32 %s198, 1
        %s653 = scalar_lea.sflag [#allocation3], %s652
        %s654 = sand.u32 %s198, 1
        %s655 = smul.addr %s654, 16
        %s656 = scalar_lea.vmem [#allocation2], %s655
        // Predicated region
        $region45: #{tpu_custom_call.1} parent=43 // pred_check
          %p657 = pneg %p208
        $region46: #{tpu_custom_call.1} parent=43 // pred_check_branch
          %659 = sbr.rel (%p657) target = $region48
        $region47: #{tpu_custom_call.1} parent=43 // pred_region
          %s660 = smul.u32 2, %s25
          %s662 = ssub.s32 256, 256
          %663 = vsyncadd %s653, %s662
          %s664 = smul.addr %s24, 2
          %s665 = sadd.s32 %s660, %s664
          %s666 = smul.addr %s665, 128
          %s667 = scalar_lea.hbm %s6, %s666
          %s668 = sshll.u32 %s656, 4
          %s669 = int_to_ptr.vmem [resolvable:$true] %s668
          %674 = dma.vmem_to_hbm [thread:$0]  %s669, 256, %s667, %s653, 128, 128, 8
        $region48: #{tpu_custom_call.1} parent=43 // pred_fallthru
          _
      $region44: #{tpu_custom_call.1} parent=5 // pred_fallthru
        _
      %p675 = scmp.le.s32.totalorder 2, %s15
      // Predicated region
      $region49: #{tpu_custom_call.1} parent=5 // pred_check
        %p676 = pneg %p675
      $region50: #{tpu_custom_call.1} parent=5 // pred_check_branch
        %678 = sbr.rel (%p676) target = $region52
      $region51: #{tpu_custom_call.1} parent=5 // pred_region
        %s679 = ssub.s32 %s15, 2
        // Predicated region
        $region53: #{tpu_custom_call.1} parent=51 // pred_check
          %p680 = pneg %p214
        $region54: #{tpu_custom_call.1} parent=51 // pred_check_branch
          %682 = sbr.rel (%p680) target = $region56
        $region55: #{tpu_custom_call.1} parent=51 // pred_region
          %s683 = sand.u32 %s199, 1
          %s684 = scalar_lea.sflag [#allocation3], %s683
          %s685 = sand.u32 %s199, 1
          %s686 = smul.addr %s685, 16
          %s687 = scalar_lea.vmem [#allocation2], %s686
          %688 = dma.done %s684, 256
        $region56: #{tpu_custom_call.1} parent=51 // pred_fallthru
          _
      $region52: #{tpu_custom_call.1} parent=5 // pred_fallthru
        _
    $region6: #{tpu_custom_call.1} parent=1 // loop_footer
      %s19 = sadd.s32 1, %s15
    $region7: #{tpu_custom_call.1} parent=1 // loop_footer_branch
      %14 = sbr.rel target = $region3
    $region8: #{tpu_custom_call.1} parent=1 // loop_exit
      _
    %689 = vsyncpa [#allocation3], 1
    %s690 = scalar_lea.sflag [#allocation3], 1
    %691 = vsyncpa %s690, 1

</llo_original>
